<compile_context>
chip_gen: v5e
topology: v5e:2x2
jax: 0.10.0
libtpu: 0.0.40
codegen_flags: <defaults>
</compile_context>

<pallas_src>
import jax
import jax.numpy as jnp
from jax.experimental import pallas as pl
from jax.experimental.pallas import tpu as pltpu


# ---------------------------------------------------------------------------
# Kernels
# ---------------------------------------------------------------------------

def _lora_kernel_accum_out(x_ref, wt_ref, b_ref, at_ref, xb_ref, o_ref):
    """General path, f32 output: accumulate directly into o_ref across k.

    x_ref  : (tm, tk)  input rows, K-slice k
    wt_ref : (tk, tn)  W^T tile (K x N layout)
    b_ref  : (1, tn)   bias tile (f32)
    at_ref : (R, tn)   (scale * A)^T tile
    xb_ref : (tm, R)   precomputed x @ B^T (resident across j, k)
    o_ref  : (tm, tn)  f32 output tile, resident across k (index_map ignores k)
    """
    k = pl.program_id(2)

    @pl.when(k == 0)
    def _init():
        o_ref[...] = jnp.zeros_like(o_ref)

    o_ref[...] += jnp.dot(x_ref[...], wt_ref[...],
                          preferred_element_type=jnp.float32)

    @pl.when(k == pl.num_programs(2) - 1)
    def _finalize():
        lora = jnp.dot(xb_ref[...], at_ref[...],
                       preferred_element_type=jnp.float32)
        o_ref[...] = o_ref[...] + lora + b_ref[...]


def _lora_kernel_cast_out(x_ref, wt_ref, b_ref, at_ref, xb_ref, o_ref, acc_ref):
    """General path, non-f32 output: f32 scratch accumulator + final cast."""
    k = pl.program_id(2)

    @pl.when(k == 0)
    def _init():
        acc_ref[...] = jnp.zeros_like(acc_ref)

    acc_ref[...] += jnp.dot(x_ref[...], wt_ref[...],
                            preferred_element_type=jnp.float32)

    @pl.when(k == pl.num_programs(2) - 1)
    def _finalize():
        lora = jnp.dot(xb_ref[...], at_ref[...],
                       preferred_element_type=jnp.float32)
        o_ref[...] = (acc_ref[...] + lora + b_ref[...]).astype(o_ref.dtype)


def _lora_kernel_skinny(x_ref, wt_ref, b_ref, at_ref, xb_ref, o_ref):
    """Skinny-M path: x and xb fully resident, 1-D grid over N, no K loop."""
    acc = jnp.dot(x_ref[...], wt_ref[...], preferred_element_type=jnp.float32)
    acc += jnp.dot(xb_ref[...], at_ref[...], preferred_element_type=jnp.float32)
    o_ref[...] = (acc + b_ref[...]).astype(o_ref.dtype)


# ---------------------------------------------------------------------------
# Wrappers
# ---------------------------------------------------------------------------

def _choose_tile(dim, target, align):
    """Largest multiple of `align` that divides `dim` and is <= target.

    Falls back to the full dim (always legal per the (8,128)-or-full-dim rule,
    and guarantees exact division so no padded garbage pollutes accumulators).
    """
    if dim <= target:
        return dim
    t = (target // align) * align
    while t >= align:
        if dim % t == 0:
            return t
        t -= align
    return dim


def prepare_lora_weights(w, bias, A, B, scale, *, use_bf16=True):
    """One-time layout plumbing of the frozen weights (do this at model load).

    Returns (w_t, bias2d, a_t_scaled, b_t):
      w_t   : (K, N)  W^T in compute dtype
      bias2d: (1, N)  bias, f32
      a_t   : (R, N)  (scale * A)^T in compute dtype (scale pre-folded)
      b_t   : (K, R)  B^T, f32 (used for the per-call xb precompute)
    """
    compute_dtype = jnp.bfloat16 if use_bf16 else jnp.float32
    w_t = jnp.swapaxes(w, 0, 1).astype(compute_dtype)                 # (K, N)
    a_t = (scale * jnp.swapaxes(A, 0, 1)).astype(compute_dtype)       # (R, N)
    b_t = jnp.swapaxes(B, 0, 1).astype(jnp.float32)                   # (K, R)
    bias2d = bias.reshape(1, -1).astype(jnp.float32)                  # (1, N)
    return w_t, bias2d, a_t, b_t


def lora_linear_prepared(x, w_t, bias2d, a_t, b_t, *,
                         tm=512, tn=512, tk=1024,
                         skinny_m_threshold=256,
                         vmem_limit_bytes=48 * 1024 * 1024):
    """y = x @ W^T + b + (x @ B^T) @ (scale*A)^T with pre-prepared weights."""
    M, K = x.shape
    N = w_t.shape[1]
    R = a_t.shape[0]
    compute_dtype = w_t.dtype
    out_dtype = x.dtype

    # Low-rank intermediate, computed once per call (tiny [M,K]@[K,R] GEMM).
    xb = jnp.dot(x.astype(jnp.float32), b_t,
                 preferred_element_type=jnp.float32).astype(compute_dtype)
    x_in = x.astype(compute_dtype)

    itemsize = jnp.dtype(compute_dtype).itemsize

    # ---- Skinny-M (decode/serving) specialization -------------------------
    tn_s = _choose_tile(N, tn, 128)
    skinny_vmem = ((M * K + 2 * K * tn_s + R * tn_s + M * R) * itemsize
                   + 2 * M * tn_s * jnp.dtype(out_dtype).itemsize
                   + tn_s * 4)
    if M <= skinny_m_threshold and skinny_vmem <= vmem_limit_bytes // 2:
        return pl.pallas_call(
            _lora_kernel_skinny,
            out_shape=jax.ShapeDtypeStruct((M, N), out_dtype),
            grid_spec=pltpu.PrefetchScalarGridSpec(
                num_scalar_prefetch=0,
                grid=(N // tn_s,),
                in_specs=[
                    pl.BlockSpec((M, K), lambda j: (0, 0)),      # x (resident)
                    pl.BlockSpec((K, tn_s), lambda j: (0, j)),   # W^T stream
                    pl.BlockSpec((1, tn_s), lambda j: (0, j)),   # bias
                    pl.BlockSpec((R, tn_s), lambda j: (0, j)),   # (scale*A)^T
                    pl.BlockSpec((M, R), lambda j: (0, 0)),      # xb (resident)
                ],
                out_specs=pl.BlockSpec((M, tn_s), lambda j: (0, j)),
            ),
            compiler_params=pltpu.CompilerParams(
                dimension_semantics=("parallel",),
                vmem_limit_bytes=vmem_limit_bytes),
        )(x_in, w_t, bias2d, a_t, xb)

    # ---- General tiled path ------------------------------------------------
    tm = _choose_tile(M, tm, 8)
    tn = _choose_tile(N, tn, 128)
    tk = _choose_tile(K, tk, 128)
    grid = (M // tm, N // tn, K // tk)   # exact division guaranteed above

    f32_out = jnp.dtype(out_dtype) == jnp.dtype(jnp.float32)
    kernel = _lora_kernel_accum_out if f32_out else _lora_kernel_cast_out
    scratch = [] if f32_out else [pltpu.VMEM((tm, tn), jnp.float32)]

    return pl.pallas_call(
        kernel,
        out_shape=jax.ShapeDtypeStruct((M, N), out_dtype),
        grid_spec=pltpu.PrefetchScalarGridSpec(
            num_scalar_prefetch=0,
            grid=grid,
            in_specs=[
                pl.BlockSpec((tm, tk), lambda i, j, k: (i, k)),   # x tile
                # NOTE(v5e): pipeline_mode=pl.Buffered(3) here if the W stream
                # exposes DMA latency; VMEM is ample on v5e/v6e.
                pl.BlockSpec((tk, tn), lambda i, j, k: (k, j)),   # W^T tile
                pl.BlockSpec((1, tn), lambda i, j, k: (0, j)),    # bias tile
                pl.BlockSpec((R, tn), lambda i, j, k: (0, j)),    # (scale*A)^T
                pl.BlockSpec((tm, R), lambda i, j, k: (i, 0)),    # xb (resident)
            ],
            out_specs=pl.BlockSpec((tm, tn), lambda i, j, k: (i, j)),
            scratch_shapes=scratch,
        ),
        compiler_params=pltpu.CompilerParams(
            # M/N parallel (megacore-shardable on v7x), K reduction last.
            dimension_semantics=("parallel", "parallel", "arbitrary"),
            vmem_limit_bytes=vmem_limit_bytes,   # fits v7x 64 MiB physical VMEM
        ),
    )(x_in, w_t, bias2d, a_t, xb)


def lora_linear(x, w, bias, A, B, scale, *, use_bf16=True, **kwargs):
    """Convenience wrapper: x [M,K]; w [N,K]; bias [N]; A [N,R]; B [R,K]."""
    w_t, bias2d, a_t, b_t = prepare_lora_weights(w, bias, A, B, scale,
                                                 use_bf16=use_bf16)
    return lora_linear_prepared(x, w_t, bias2d, a_t, b_t, **kwargs)


def reference(x, w, bias, A, B, scale):
    delta_w = scale * (A @ B)           # (N, K)
    return x @ w.T + bias + x @ delta_w.T


# ---------------------------------------------------------------------------
# Self-test
# ---------------------------------------------------------------------------

if __name__ == "__main__":
    key = jax.random.PRNGKey(0)
    k_x, k_w, k_b, k_a, k_bb = jax.random.split(key, 5)

    batch = 8
    in_features = 32
    out_features = 32
    rank = 4
    alpha = 1.0
    scale = alpha / rank

    # Deterministic parameter init (mirrors nn.Linear default + LoRA randn*0.01).
    bound = 1.0 / jnp.sqrt(in_features)
    x = jax.random.normal(k_x, (batch, in_features), dtype=jnp.float32)
    w = jax.random.uniform(k_w, (out_features, in_features),
                           minval=-bound, maxval=bound, dtype=jnp.float32)
    bias = jax.random.uniform(k_b, (out_features,),
                              minval=-bound, maxval=bound, dtype=jnp.float32)
    A = 0.01 * jax.random.normal(k_a, (out_features, rank), dtype=jnp.float32)
    B = 0.01 * jax.random.normal(k_bb, (rank, in_features), dtype=jnp.float32)

    ref = reference(x, w, bias, A, B, scale)

    # 1) Default path: bf16 frozen weights, skinny-M specialization.
    out_bf16 = jax.block_until_ready(lora_linear(x, w, bias, A, B, scale,
                                                 use_bf16=True))
    assert jnp.allclose(out_bf16, ref, atol=5e-2, rtol=5e-2), (
        f"bf16 path max abs err {jnp.max(jnp.abs(out_bf16 - ref))}")

    # 2) Strict f32 path (bit-close to the PyTorch reference), skinny-M.
    out_f32 = jax.block_until_ready(lora_linear(x, w, bias, A, B, scale,
                                                use_bf16=False))
    assert jnp.allclose(out_f32, ref, atol=1e-4, rtol=1e-4), (
        f"f32 skinny path max abs err {jnp.max(jnp.abs(out_f32 - ref))}")

    # 3) Force the general tiled (i, j, k) path to exercise the accumulator
    #    kernel as well (skinny_m_threshold=0 disables the specialization).
    out_grid = jax.block_until_ready(lora_linear(x, w, bias, A, B, scale,
                                                 use_bf16=False,
                                                 skinny_m_threshold=0))
    assert jnp.allclose(out_grid, ref, atol=1e-4, rtol=1e-4), (
        f"f32 grid path max abs err {jnp.max(jnp.abs(out_grid - ref))}")

    print("KERNEL_OK")
</pallas_src>

<mosaic_0001>
module attributes {stable_mosaic.version = 11 : i64} {
  func.func @_lora_kernel_skinny(%arg0: i32, %arg1: memref<8x32xbf16, #tpu.memory_space<vmem>>, %arg2: memref<32x32xbf16, #tpu.memory_space<vmem>>, %arg3: memref<1x32xf32, #tpu.memory_space<vmem>>, %arg4: memref<4x32xbf16, #tpu.memory_space<vmem>>, %arg5: memref<8x4xbf16, #tpu.memory_space<vmem>>, %arg6: memref<8x32xf32, #tpu.memory_space<vmem>>) attributes {dimension_semantics = [#tpu.dimension_semantics<parallel>], iteration_bounds = array<i64: 1>, scalar_prefetch = 0 : i64, scratch_operands = 0 : i64, tpu.core_type = #tpu.core_type<tc>, window_params = [{pipeline_mode = #tpu.pipeline_mode<synchronous>, transform_indices = @transform_0, window_bounds = array<i64: 8, 32>}, {transform_indices = @transform_1, window_bounds = array<i64: 32, 32>}, {transform_indices = @transform_2, window_bounds = array<i64: 1, 32>}, {transform_indices = @transform_3, window_bounds = array<i64: 4, 32>}, {pipeline_mode = #tpu.pipeline_mode<synchronous>, transform_indices = @transform_4, window_bounds = array<i64: 8, 4>}, {transform_indices = @transform_5, window_bounds = array<i64: 8, 32>}]} {
    %c0 = arith.constant 0 : index
    %c0_0 = arith.constant 0 : index
    %0 = vector.load %arg1[%c0, %c0_0] : memref<8x32xbf16, #tpu.memory_space<vmem>>, vector<8x32xbf16>
    %c0_1 = arith.constant 0 : index
    %c0_2 = arith.constant 0 : index
    %1 = vector.load %arg2[%c0_1, %c0_2] : memref<32x32xbf16, #tpu.memory_space<vmem>>, vector<32x32xbf16>
    %cst = arith.constant dense<0.000000e+00> : vector<8x32xf32>
    %2 = tpu.matmul %0, %1, %cst {dimension_numbers = #tpu.dot_dimension_numbers<[1], [0], [0], [1], [0, 0, 1, 1], [], []>} : vector<8x32xbf16>, vector<32x32xbf16>, vector<8x32xf32> -> vector<8x32xf32>
    %c0_3 = arith.constant 0 : index
    %c0_4 = arith.constant 0 : index
    %3 = vector.load %arg5[%c0_3, %c0_4] : memref<8x4xbf16, #tpu.memory_space<vmem>>, vector<8x4xbf16>
    %c0_5 = arith.constant 0 : index
    %c0_6 = arith.constant 0 : index
    %4 = vector.load %arg4[%c0_5, %c0_6] : memref<4x32xbf16, #tpu.memory_space<vmem>>, vector<4x32xbf16>
    %cst_7 = arith.constant dense<0.000000e+00> : vector<8x32xf32>
    %5 = tpu.matmul %3, %4, %cst_7 {dimension_numbers = #tpu.dot_dimension_numbers<[1], [0], [0], [1], [0, 0, 1, 1], [], []>} : vector<8x4xbf16>, vector<4x32xbf16>, vector<8x32xf32> -> vector<8x32xf32>
    %6 = arith.addf %2, %5 : vector<8x32xf32>
    %c0_8 = arith.constant 0 : index
    %c0_9 = arith.constant 0 : index
    %7 = vector.load %arg3[%c0_8, %c0_9] : memref<1x32xf32, #tpu.memory_space<vmem>>, vector<1x32xf32>
    %8 = vector.broadcast %7 : vector<1x32xf32> to vector<8x32xf32>
    %9 = arith.addf %6, %8 : vector<8x32xf32>
    %c0_10 = arith.constant 0 : index
    %c0_11 = arith.constant 0 : index
    %10 = vector.load %arg6[%c0_10, %c0_11] : memref<8x32xf32, #tpu.memory_space<vmem>>, vector<8x32xf32>
    tpu.vector_store %arg6[%c0_10, %c0_11], %9 {strides = array<i32>} : memref<8x32xf32, #tpu.memory_space<vmem>>, vector<8x32xf32>,
    return
  }
  func.func @transform_0(%arg0: i32) -> (i32, i32) {
    %c0_i32 = arith.constant 0 : i32
    %c0_i32_0 = arith.constant 0 : i32
    %c0_i32_1 = arith.constant 0 : i32
    return %c0_i32, %c0_i32_0 : i32, i32
  }
  func.func @transform_1(%arg0: i32) -> (i32, i32) {
    %c0_i32 = arith.constant 0 : i32
    %c0_i32_0 = arith.constant 0 : i32
    return %c0_i32, %arg0 : i32, i32
  }
  func.func @transform_2(%arg0: i32) -> (i32, i32) {
    %c0_i32 = arith.constant 0 : i32
    %c0_i32_0 = arith.constant 0 : i32
    return %c0_i32, %arg0 : i32, i32
  }
  func.func @transform_3(%arg0: i32) -> (i32, i32) {
    %c0_i32 = arith.constant 0 : i32
    %c0_i32_0 = arith.constant 0 : i32
    return %c0_i32, %arg0 : i32, i32
  }
  func.func @transform_4(%arg0: i32) -> (i32, i32) {
    %c0_i32 = arith.constant 0 : i32
    %c0_i32_0 = arith.constant 0 : i32
    %c0_i32_1 = arith.constant 0 : i32
    return %c0_i32, %c0_i32_0 : i32, i32
  }
  func.func @transform_5(%arg0: i32) -> (i32, i32) {
    %c0_i32 = arith.constant 0 : i32
    %c0_i32_0 = arith.constant 0 : i32
    return %c0_i32, %arg0 : i32, i32
  }
}

</mosaic_0001>

<llo_original>
// kernel: tpu_custom_call.1
$region0: #{tpu_custom_call.1}
  #allocation0 [shape = 'u32[]', space=smem, size = 0x4, offset = 0x4, fixed_abs, tag = 'smem constant byte address 0x4 - core index']
  #allocation1 [shape = 'u32[72,128]{1,0:T(1,128)}', space=vmem, size = 0x9000, scoped, tag = 'internal scratch']
  %s0 = inlined_call_operand.vmem [shape: bf16[8,32], index: 0, kind: input, shape index: {}]
  %s1 = inlined_call_operand.hbm [shape: bf16[32,32], index: 1, kind: input, shape index: {}]
  %s2 = inlined_call_operand.vmem [shape: f32[1,32], index: 2, kind: input, shape index: {}]
  %s3 = inlined_call_operand.vmem [shape: bf16[4,32], index: 3, kind: input, shape index: {}]
  %s4 = inlined_call_operand.vmem [shape: bf16[8,4], index: 4, kind: input, shape index: {}]
  %s5 = inlined_call_operand.hbm [shape: f32[8,32], index: 5, kind: output, shape index: {}]
  %s6 = sld [smem:[#allocation0]]
  $region34: #{tpu_custom_call.1} parent=0
    _
  %s8 = ssub.s32 1, %s6
  %s9 = scalar_select 0, %s8, %s6
  $region1: #{tpu_custom_call.1} parent=0
    #allocation2 [shape = 'u8[8192]{0}', space=vmem, size = 0x2000, scoped, tag = 'input window, operand 1, single buffered']
    #allocation3 [shape = 's32[1]{0}', space=sflag, size = 0x4, scoped, tag = 'scoped memory for tpu_custom_call.1']
    #allocation4 [shape = 's32[1]{0}', space=sflag, size = 0x4, scoped, tag = 'scoped memory for tpu_custom_call.1']
    #allocation5 [shape = 'u8[4096]{0}', space=vmem, size = 0x1000, scoped, tag = 'output window, operand 0, single buffered']
    %10 = vsyncpa [#allocation3], 0
    %11 = vsyncpa [#allocation4], 0
    // Predicated region
    $region2: #{tpu_custom_call.1} parent=1 // pred_check
      _
    $region3: #{tpu_custom_call.1} parent=1 // pred_check_branch
      %13 = sbr.rel (0) target = $region5
    $region4: #{tpu_custom_call.1} parent=1 // pred_region
      _
    $region5: #{tpu_custom_call.1} parent=1 // pred_fallthru
      _
    // Predicated region
    $region6: #{tpu_custom_call.1} parent=1 // pred_check
      _
    $region7: #{tpu_custom_call.1} parent=1 // pred_check_branch
      %15 = sbr.rel (0) target = $region9
    $region8: #{tpu_custom_call.1} parent=1 // pred_region
      %17 = vsyncadd [#allocation3], 0
      %s18 = sshll.u32 %s1, 4
      %s19 = int_to_ptr.hbm [resolvable:$true] %s18
      %s20 = sshll.u32 [#allocation2], 4
      %s21 = int_to_ptr.vmem [resolvable:$true] %s20
      %26 = dma.hbm_to_vmem [thread:$0]  %s19, 256, %s21, [#allocation3], 64, 64, 4
    $region9: #{tpu_custom_call.1} parent=1 // pred_fallthru
      _
    // Predicated region
    $region10: #{tpu_custom_call.1} parent=1 // pred_check
      _
    $region11: #{tpu_custom_call.1} parent=1 // pred_check_branch
      %28 = sbr.rel (0) target = $region13
    $region12: #{tpu_custom_call.1} parent=1 // pred_region
      _
    $region13: #{tpu_custom_call.1} parent=1 // pred_fallthru
      _
    // Predicated region
    $region14: #{tpu_custom_call.1} parent=1 // pred_check
      _
    $region15: #{tpu_custom_call.1} parent=1 // pred_check_branch
      %30 = sbr.rel (0) target = $region17
    $region16: #{tpu_custom_call.1} parent=1 // pred_region
      _
    $region17: #{tpu_custom_call.1} parent=1 // pred_fallthru
      _
    // Predicated region
    $region18: #{tpu_custom_call.1} parent=1 // pred_check
      _
    $region19: #{tpu_custom_call.1} parent=1 // pred_check_branch
      %32 = sbr.rel (0) target = $region21
    $region20: #{tpu_custom_call.1} parent=1 // pred_region
      _
    $region21: #{tpu_custom_call.1} parent=1 // pred_fallthru
      _
    // Predicated region
    $region22: #{tpu_custom_call.1} parent=1 // pred_check
      _
    $region23: #{tpu_custom_call.1} parent=1 // pred_check_branch
      %34 = sbr.rel (0) target = $region25
    $region24: #{tpu_custom_call.1} parent=1 // pred_region
      %36 = dma.done [#allocation3], 256
    $region25: #{tpu_custom_call.1} parent=1 // pred_fallthru
      _
    %v38 = vld [vmem:[%s0] sm:$0xf]
    %v39 = vld [vmem:[#allocation2] sm:$0xf]
    %v40 = vld [vmem:[#allocation2 + $0x4] sm:$0xf]
    %v41 = vld [vmem:[#allocation2 + $0x8] sm:$0xf]
    %v42 = vld [vmem:[#allocation2 + $0xc] sm:$0xf]
    %v43 = vld [vmem:[%s4] sm:$0xf]
    %v44 = vld [vmem:[%s3] sm:$0x3]
    %vm45 = vcmask 31744
    %v47 = vsel %vm45, %v43, 0
    %vm49 = vcmask 1041408
    %v51 = vsel %vm49, %v44, 0
    %53 = vmatpush.bf16.msra.mxu0 0
    %54 = vmatpush.bf16.msra.mxu0 0
    %55 = vmatpush.bf16.msra.mxu0 0
    %56 = vmatpush.bf16.msra.mxu0 0
    %57 = vmatpush.bf16.msra.mxu0 0
    %58 = vmatpush.bf16.msra.mxu0 0
    %59 = vmatpush.bf16.msra.mxu0 0
    %60 = vmatpush.bf16.msra.mxu0 %v51
    %61 = vmatmul.bf16.gmra.mxu0 %v47
    %v62 = vpop.f32.mrf.mxu0
    %v63 = vadd.f32 0.0, %v62
    %v64 = vpop.f32.mrf.mxu0
    %65 = vdwg.mxu0
    %v70 = vunpack.c.l.b16 %v39
    %v71 = vunpack.c.l.b16 %v40
    %v72 = vunpack.c.l.b16 %v41
    %v73 = vunpack.c.l.b16 %v42
    %v74 = vpack.c.b16 %v71, %v70
    %v75 = vpack.c.b16 %v73, %v72
    %vm78 = vcmask 261120
    %v80 = vsel %vm78, %v38, 0
    %82 = vmatpush.bf16.msra.mxu0 0
    %83 = vmatpush.bf16.msra.mxu0 0
    %84 = vmatpush.bf16.msra.mxu0 0
    %85 = vmatpush.bf16.msra.mxu0 0
    %86 = vmatpush.bf16.msra.mxu0 0
    %87 = vmatpush.bf16.msra.mxu0 0
    %88 = vmatpush.bf16.msra.mxu0 %v75
    %89 = vmatpush.bf16.msra.mxu0 %v74
    %90 = vmatmul.bf16.gmra.mxu0 %v80
    %v91 = vpop.f32.mrf.mxu0
    %v92 = vadd.f32 %v63, %v91
    %v93 = vpop.f32.mrf.mxu0
    %94 = vdwg.mxu0
    %v95 = vld [vmem:[%s2] sm:$0x1]
    %v97 = vperm.slane %v95, 0
    %v99 = vadd.f32 %v92, %v97
    %100 = vst.msk [vmem:[#allocation5] sm:$0xff] %vm78, %v99
    // Predicated region
    $region26: #{tpu_custom_call.1} parent=1 // pred_check
      _
    $region27: #{tpu_custom_call.1} parent=1 // pred_check_branch
      %102 = sbr.rel (0) target = $region29
    $region28: #{tpu_custom_call.1} parent=1 // pred_region
      %104 = vsyncadd [#allocation4], 0
      %s106 = sshll.u32 [#allocation5], 4
      %s107 = int_to_ptr.vmem [resolvable:$true] %s106
      %s108 = sshll.u32 %s5, 4
      %s109 = int_to_ptr.hbm [resolvable:$true] %s108
      %111 = dma.vmem_to_hbm [thread:$0]  %s107, 128, %s109, [#allocation4]
    $region29: #{tpu_custom_call.1} parent=1 // pred_fallthru
      _
    // Predicated region
    $region30: #{tpu_custom_call.1} parent=1 // pred_check
      _
    $region31: #{tpu_custom_call.1} parent=1 // pred_check_branch
      %113 = sbr.rel (0) target = $region33
    $region32: #{tpu_custom_call.1} parent=1 // pred_region
      %115 = dma.done [#allocation4], 128
    $region33: #{tpu_custom_call.1} parent=1 // pred_fallthru
      _
    %116 = vsyncpa [#allocation3], 1
    %117 = vsyncpa [#allocation4], 1

</llo_original>
